<compile_context>
chip_gen: v5e
topology: v5e:2x2
jax: 0.10.0
libtpu: 0.0.40
codegen_flags: <defaults>
</compile_context>

<pallas_src>
import jax
import jax.numpy as jnp
from jax.experimental import pallas as pl
from jax.experimental.pallas import tpu as pltpu


def _ce_rows_kernel(logits_ref, tgt_ref, loss_ref):
    # logits_ref: (1, RT, C)  any float dtype (cast to f32 here; bf16 inputs
    #                          stay bf16 on the HBM side -> half the traffic)
    # tgt_ref:    (1, RT, 1)  int32, already shifted by +1 in the wrapper
    # loss_ref:   (1, RT, 1)  f32, per-row -log_softmax(x)[target]
    x = logits_ref[...].astype(jnp.float32)                     # (1, RT, C)
    t = tgt_ref[...]                                            # (1, RT, 1)

    row_max = jnp.max(x, axis=-1, keepdims=True)                # (1, RT, 1)
    xs = x - row_max                                            # <= 0
    sum_exp = jnp.sum(jnp.exp(xs), axis=-1, keepdims=True)      # (1, RT, 1)

    col = jax.lax.broadcasted_iota(jnp.int32, x.shape, 2)       # (1, RT, C)
    tgt_shift = jnp.sum(jnp.where(col == t, xs, 0.0),
                        axis=-1, keepdims=True)                 # (1, RT, 1)

    # loss = logsumexp(x) - x[target] = log(sum_exp) - (x[target] - row_max)
    loss_ref[...] = jnp.log(sum_exp) - tgt_shift


def _vmem_capacity_bytes(default=128 * 1024 * 1024):
    try:
        info = pltpu.get_tpu_info()
        return int(getattr(info, "vmem_capacity_bytes", default))
    except Exception:
        return default


def _pick_row_tile(requested, n_rows, vocab, itemsize, vmem_limit):
    # Fit a double-buffered (row_tile, C) logits tile into ~half of the scoped
    # VMEM limit (rest: target/output buffers + headroom).
    budget = vmem_limit // 2
    max_rows = max(8, budget // (2 * max(vocab, 1) * itemsize))
    rt = min(int(requested), int(max_rows))
    rt = min(rt, ((n_rows + 7) // 8) * 8)   # no point exceeding round_up(T-1, 8)
    rt = max(8, (rt // 8) * 8)
    return int(rt)


def model_loss(logits, labels, mask, *, row_tile=512):
    """Pallas equivalent of ModelLoss.forward. Returns {'loss': scalar}."""
    B, T, C = logits.shape
    Tm1 = T - 1

    vmem_phys = _vmem_capacity_bytes()
    vmem_limit = min(vmem_phys // 2, 64 * 1024 * 1024)
    rt = _pick_row_tile(row_tile, Tm1, C, jnp.dtype(logits.dtype).itemsize,
                        vmem_limit)
    num_blocks = pl.cdiv(Tm1, rt)
    t_pad = num_blocks * rt

    # Shift labels/mask (tiny [B, T] arrays -> negligible glue).  Targets are
    # padded so their blocks are always fully in bounds; padded / shifted-out
    # rows of the kernel output are simply sliced away below.  Any
    # out-of-bounds logits rows in the final partial block only feed rows that
    # get discarded, so their (unspecified) contents never reach the loss.
    targets = labels[..., 1:].astype(jnp.int32)                       # (B, T-1)
    mask_s = mask[..., 1:].astype(jnp.float32)                        # (B, T-1)
    tgt_p = jnp.pad(targets, ((0, 0), (0, t_pad - Tm1)))[..., None]   # (B, t_pad, 1)

    per_row = pl.pallas_call(
        _ce_rows_kernel,
        out_shape=jax.ShapeDtypeStruct((B, t_pad, 1), jnp.float32),
        grid_spec=pltpu.PrefetchScalarGridSpec(
            num_scalar_prefetch=0,
            grid=(B, num_blocks),
            in_specs=[
                pl.BlockSpec((1, rt, C), lambda b, j: (b, j, 0)),
                pl.BlockSpec((1, rt, 1), lambda b, j: (b, j, 0)),
            ],
            out_specs=pl.BlockSpec((1, rt, 1), lambda b, j: (b, j, 0)),
        ),
        compiler_params=pltpu.CompilerParams(
            dimension_semantics=("parallel", "parallel"),
            vmem_limit_bytes=vmem_limit,
        ),
    )(logits, tgt_p)

    # TODO(synk): for extreme vocabularies where even an (8, C) f32 row tile no
    # longer fits VMEM, add a vocab grid axis with online (flash-style)
    # logsumexp accumulation.

    loss_rows = per_row[:, :Tm1, 0]                      # (B, T-1) valid rows only
    final_loss = jnp.sum(loss_rows * mask_s) / jnp.sum(mask_s)
    return {"loss": final_loss}


def _reference_loss(logits, labels, mask):
    """Pure-JAX reference reproducing the PyTorch semantics."""
    logits_s = logits[..., :-1, :]
    targets = labels[..., 1:]
    mask_s = mask[..., 1:]
    B, Tm1, C = logits_s.shape
    x = logits_s.reshape(B * Tm1, C).astype(jnp.float32)
    t = targets.reshape(-1)
    lse = jax.scipy.special.logsumexp(x, axis=-1)
    tgt_logit = jnp.take_along_axis(x, t[:, None], axis=-1)[:, 0]
    loss = lse - tgt_logit
    m = mask_s.reshape(-1).astype(jnp.float32)
    return jnp.sum(loss * m) / jnp.sum(m)


if __name__ == "__main__":
    key = jax.random.PRNGKey(0)
    B, T, C = 2, 8, 32  # small shapes consistent with the forward pass

    k1, k2, k3 = jax.random.split(key, 3)
    logits = jax.random.normal(k1, (B, T, C), dtype=jnp.float32)
    labels = jax.random.randint(k2, (B, T), 0, C, dtype=jnp.int32)
    mask = (jax.random.uniform(k3, (B, T)) > 0.3).astype(jnp.float32)
    # guarantee a nonzero mask sum after the shift
    mask = mask.at[:, 1].set(1.0)

    out = model_loss(logits, labels, mask)
    loss = jax.block_until_ready(out["loss"])

    ref = _reference_loss(logits, labels, mask)
    assert jnp.allclose(loss, ref, rtol=1e-5, atol=1e-5), (loss, ref)

    print("KERNEL_OK")
</pallas_src>

<mosaic_0001>
module attributes {stable_mosaic.version = 11 : i64} {
  func.func @_ce_rows_kernel(%arg0: i32, %arg1: i32, %arg2: memref<1x8x32xf32, #tpu.memory_space<vmem>>, %arg3: memref<1x8x1xi32, #tpu.memory_space<vmem>>, %arg4: memref<1x8x1xf32, #tpu.memory_space<vmem>>) attributes {dimension_semantics = [#tpu.dimension_semantics<parallel>, #tpu.dimension_semantics<parallel>], iteration_bounds = array<i64: 2, 1>, scalar_prefetch = 0 : i64, scratch_operands = 0 : i64, tpu.core_type = #tpu.core_type<tc>, window_params = [{transform_indices = @transform_0, window_bounds = array<i64: 1, 8, 32>}, {transform_indices = @transform_1, window_bounds = array<i64: 1, 8, 1>}, {transform_indices = @transform_2, window_bounds = array<i64: 1, 8, 1>}]} {
    %c0 = arith.constant 0 : index
    %c0_0 = arith.constant 0 : index
    %c0_1 = arith.constant 0 : index
    %0 = vector.load %arg2[%c0, %c0_0, %c0_1] : memref<1x8x32xf32, #tpu.memory_space<vmem>>, vector<1x8x32xf32>
    %c0_2 = arith.constant 0 : index
    %c0_3 = arith.constant 0 : index
    %c0_4 = arith.constant 0 : index
    %1 = vector.load %arg3[%c0_2, %c0_3, %c0_4] : memref<1x8x1xi32, #tpu.memory_space<vmem>>, vector<1x8x1xi32>
    %cst = arith.constant dense<0xFF800000> : vector<1x8xf32>
    %2 = vector.multi_reduction <maximumf>, %0, %cst [2] : vector<1x8x32xf32> to vector<1x8xf32>
    %3 = vector.shape_cast %2 : vector<1x8xf32> to vector<1x8x1xf32>
    %4 = vector.broadcast %3 : vector<1x8x1xf32> to vector<1x8x32xf32>
    %5 = arith.subf %0, %4 : vector<1x8x32xf32>
    %6 = math.exp %5 : vector<1x8x32xf32>
    %cst_5 = arith.constant dense<0.000000e+00> : vector<1x8xf32>
    %7 = vector.multi_reduction <add>, %6, %cst_5 [2] : vector<1x8x32xf32> to vector<1x8xf32>
    %8 = vector.shape_cast %7 : vector<1x8xf32> to vector<1x8x1xf32>
    %9 = tpu.iota {dimensions = array<i32: 2>} : vector<1x8x32xi32>
    %10 = vector.broadcast %1 : vector<1x8x1xi32> to vector<1x8x32xi32>
    %11 = arith.cmpi eq, %9, %10 : vector<1x8x32xi32>
    %cst_6 = arith.constant 0.000000e+00 : f32
    %12 = vector.broadcast %cst_6 : f32 to vector<1x8x32xf32>
    %13 = arith.select %11, %5, %12 : vector<1x8x32xi1>, vector<1x8x32xf32>
    %cst_7 = arith.constant dense<0.000000e+00> : vector<1x8xf32>
    %14 = vector.multi_reduction <add>, %13, %cst_7 [2] : vector<1x8x32xf32> to vector<1x8xf32>
    %15 = vector.shape_cast %14 : vector<1x8xf32> to vector<1x8x1xf32>
    %16 = math.log %8 : vector<1x8x1xf32>
    %17 = arith.subf %16, %15 : vector<1x8x1xf32>
    %c0_8 = arith.constant 0 : index
    %c0_9 = arith.constant 0 : index
    %c0_10 = arith.constant 0 : index
    %18 = vector.load %arg4[%c0_8, %c0_9, %c0_10] : memref<1x8x1xf32, #tpu.memory_space<vmem>>, vector<1x8x1xf32>
    tpu.vector_store %arg4[%c0_8, %c0_9, %c0_10], %17 {strides = array<i32>} : memref<1x8x1xf32, #tpu.memory_space<vmem>>, vector<1x8x1xf32>,
    return
  }
  func.func @transform_0(%arg0: i32, %arg1: i32) -> (i32, i32, i32) {
    %c0_i32 = arith.constant 0 : i32
    %c0_i32_0 = arith.constant 0 : i32
    return %arg0, %arg1, %c0_i32 : i32, i32, i32
  }
  func.func @transform_1(%arg0: i32, %arg1: i32) -> (i32, i32, i32) {
    %c0_i32 = arith.constant 0 : i32
    %c0_i32_0 = arith.constant 0 : i32
    return %arg0, %arg1, %c0_i32 : i32, i32, i32
  }
  func.func @transform_2(%arg0: i32, %arg1: i32) -> (i32, i32, i32) {
    %c0_i32 = arith.constant 0 : i32
    %c0_i32_0 = arith.constant 0 : i32
    return %arg0, %arg1, %c0_i32 : i32, i32, i32
  }
}

</mosaic_0001>

<llo_original>
// kernel: tpu_custom_call.1
$region0: #{tpu_custom_call.1}
  #allocation0 [shape = 'u32[]', space=smem, size = 0x4, offset = 0x4, fixed_abs, tag = 'smem constant byte address 0x4 - core index']
  #allocation1 [shape = 'u32[72,128]{1,0:T(1,128)}', space=vmem, size = 0x9000, scoped, tag = 'internal scratch']
  %s0 = inlined_call_operand.vmem [shape: f32[2,8,32], index: 0, kind: input, shape index: {}]
  %s1 = inlined_call_operand.vmem [shape: s32[2,8,1], index: 1, kind: input, shape index: {}]
  %s2 = inlined_call_operand.vmem [shape: f32[2,8,1], index: 2, kind: output, shape index: {}]
  %s3 = sld [smem:[#allocation0]]
  $region41: #{tpu_custom_call.1} parent=0
    _
  %s5 = ssub.s32 1, %s3
  %s6 = scalar_select 0, %s5, %s3
  loop: start=0, step=1, limit=4
  $region2: #{tpu_custom_call.1} parent=0 // loop_pre_header
    _
  $region3: #{tpu_custom_call.1} parent=0 // loop_header
    %s8 = sphi 0, %s12
    %p9 = scmp.ge.s32.totalorder %s8, 4
    %s15 = sphi 0, %s27
    %s16 = sphi 0, %s23
    %s17 = sphi 0, %s15
    %s18 = sphi 0, %s16
    %s19 = sphi 0, %s17
    %s20 = sphi 0, %s18
    %s32 = sphi 0, %s34
    %s35 = sphi 0, %s32
    %s36 = sphi 0, %s35
    %s52 = sphi 0, %s36
    %s60 = sphi 0, %s62
    %s63 = sphi 0, %s60
    %s64 = sphi 0, %s63
    %s80 = sphi 0, %s64
    %s88 = sphi 0, %s90
    %s91 = sphi 0, %s88
    %s92 = sphi 0, %s91
    %s108 = sphi 0, %s92
  $region4: #{tpu_custom_call.1} parent=0 // loop_header_branch
    %11 = sbr.rel (%p9) target = $region8
  $region5: #{tpu_custom_call.1} parent=0 // loop_body
    %s13 = ssub.s32 %s8, 1
    %s14 = ssub.s32 %s8, 2
    %s21 = sadd.s32 1, %s16
    %p22 = scmp.ge.s32.totalorder %s21, 1
    %s23 = scalar_select %p22, 0, %s21
    %s24 = sadd.s32 1, %s15
    %s25 = scalar_select %p22, %s24, %s15
    %p26 = scmp.ge.s32.totalorder %s25, 2
    %s27 = scalar_select %p26, 0, %s25
    %s28 = ssub.s32 %s15, %s27
    %s29 = ssub.s32 %s16, %s23
    %s30 = sor.u32 %s28, %s29
    %p31 = scmp.eq.s32.totalorder %s30, 0
    %s33 = sadd.s32 %s32, 1
    %s34 = scalar_select %p31, %s32, %s33
    %p37 = pneg %p31
    %p38 = scmp.eq.s32.totalorder %s8, 1
    %p39 = por %p37, %p38
    %p40 = scmp.ne.s32.totalorder %s32, %s35
    %p41 = scmp.eq.s32.totalorder %s8, 0
    %p42 = por %p40, %p41
    %p43 = scmp.ne.s32.totalorder %s32, %s35
    %p44 = scmp.eq.s32.totalorder %s13, 1
    %p45 = por %p43, %p44
    %p46 = scmp.ne.s32.totalorder %s35, %s36
    %p47 = scmp.eq.s32.totalorder %s13, 0
    %p48 = por %p46, %p47
    %p49 = scmp.ne.s32.totalorder %s35, %s36
    %p50 = scmp.eq.s32.totalorder %s14, 1
    %p51 = por %p49, %p50
    %p53 = scmp.ne.s32.totalorder %s36, %s52
    %p54 = scmp.eq.s32.totalorder %s14, 0
    %p55 = por %p53, %p54
    %s56 = ssub.s32 %s15, %s27
    %s57 = ssub.s32 %s16, %s23
    %s58 = sor.u32 %s56, %s57
    %p59 = scmp.eq.s32.totalorder %s58, 0
    %s61 = sadd.s32 %s60, 1
    %s62 = scalar_select %p59, %s60, %s61
    %p65 = pneg %p59
    %p66 = scmp.eq.s32.totalorder %s8, 1
    %p67 = por %p65, %p66
    %p68 = scmp.ne.s32.totalorder %s60, %s63
    %p69 = scmp.eq.s32.totalorder %s8, 0
    %p70 = por %p68, %p69
    %p71 = scmp.ne.s32.totalorder %s60, %s63
    %p72 = scmp.eq.s32.totalorder %s13, 1
    %p73 = por %p71, %p72
    %p74 = scmp.ne.s32.totalorder %s63, %s64
    %p75 = scmp.eq.s32.totalorder %s13, 0
    %p76 = por %p74, %p75
    %p77 = scmp.ne.s32.totalorder %s63, %s64
    %p78 = scmp.eq.s32.totalorder %s14, 1
    %p79 = por %p77, %p78
    %p81 = scmp.ne.s32.totalorder %s64, %s80
    %p82 = scmp.eq.s32.totalorder %s14, 0
    %p83 = por %p81, %p82
    %s84 = ssub.s32 %s15, %s27
    %s85 = ssub.s32 %s16, %s23
    %s86 = sor.u32 %s84, %s85
    %p87 = scmp.eq.s32.totalorder %s86, 0
    %s89 = sadd.s32 %s88, 1
    %s90 = scalar_select %p87, %s88, %s89
    %p93 = pneg %p87
    %p94 = scmp.eq.s32.totalorder %s8, 1
    %p95 = por %p93, %p94
    %p96 = scmp.ne.s32.totalorder %s88, %s91
    %p97 = scmp.eq.s32.totalorder %s8, 0
    %p98 = por %p96, %p97
    %p99 = scmp.ne.s32.totalorder %s88, %s91
    %p100 = scmp.eq.s32.totalorder %s13, 1
    %p101 = por %p99, %p100
    %p102 = scmp.ne.s32.totalorder %s91, %s92
    %p103 = scmp.eq.s32.totalorder %s13, 0
    %p104 = por %p102, %p103
    %p105 = scmp.ne.s32.totalorder %s91, %s92
    %p106 = scmp.eq.s32.totalorder %s14, 1
    %p107 = por %p105, %p106
    %p109 = scmp.ne.s32.totalorder %s92, %s108
    %p110 = scmp.eq.s32.totalorder %s14, 0
    %p111 = por %p109, %p110
    %p112 = scmp.le.s32.totalorder 1, %s8
    %p113 = scmp.lt.s32.totalorder %s8, 3
    %p114 = pnand %p112, %p113
    %p115 = pneg %p114
    // Predicated region
    $region9: #{tpu_custom_call.1} parent=5 // pred_check
      _
    $region10: #{tpu_custom_call.1} parent=5 // pred_check_branch
      %117 = sbr.rel (%p114) target = $region12
    $region11: #{tpu_custom_call.1} parent=5 // pred_region
      %s118 = ssub.s32 %s8, 1
    $region12: #{tpu_custom_call.1} parent=5 // pred_fallthru
      _
    %p119 = scmp.lt.s32.totalorder %s8, 2
    // Predicated region
    $region13: #{tpu_custom_call.1} parent=5 // pred_check
      %p120 = pneg %p119
    $region14: #{tpu_custom_call.1} parent=5 // pred_check_branch
      %122 = sbr.rel (%p120) target = $region16
    $region15: #{tpu_custom_call.1} parent=5 // pred_region
      // Predicated region
      $region17: #{tpu_custom_call.1} parent=15 // pred_check
        %p123 = pneg %p42
      $region18: #{tpu_custom_call.1} parent=15 // pred_check_branch
        %125 = sbr.rel (%p123) target = $region20
      $region19: #{tpu_custom_call.1} parent=15 // pred_region
        %p126 = scmp.lt.s32.totalorder %s15, 1
        %s127 = scalar_select %p126, %s15, 1
        %p128 = scmp.lt.s32.totalorder %s16, 0
        %s129 = scalar_select %p128, %s16, 0
        %s130 = sadd.s32 %s129, %s127
        %s131 = smul.addr %s130, 8
        %s132 = scalar_lea.vmem %s0, %s131
      $region20: #{tpu_custom_call.1} parent=15 // pred_fallthru
        _
      // Predicated region
      $region21: #{tpu_custom_call.1} parent=15 // pred_check
        %p133 = pneg %p70
      $region22: #{tpu_custom_call.1} parent=15 // pred_check_branch
        %135 = sbr.rel (%p133) target = $region24
      $region23: #{tpu_custom_call.1} parent=15 // pred_region
        %p136 = scmp.lt.s32.totalorder %s15, 1
        %s137 = scalar_select %p136, %s15, 1
        %p138 = scmp.lt.s32.totalorder %s16, 0
        %s139 = scalar_select %p138, %s16, 0
        %s140 = sadd.s32 %s139, %s137
        %s141 = smul.addr %s140, 8
        %s142 = scalar_lea.vmem %s1, %s141
      $region24: #{tpu_custom_call.1} parent=15 // pred_fallthru
        _
    $region16: #{tpu_custom_call.1} parent=5 // pred_fallthru
      _
    %p143 = scmp.le.s32.totalorder 1, %s8
    %p144 = scmp.lt.s32.totalorder %s8, 3
    %p145 = pnand %p143, %p144
    %p146 = pneg %p145
    // Predicated region
    $region25: #{tpu_custom_call.1} parent=5 // pred_check
      _
    $region26: #{tpu_custom_call.1} parent=5 // pred_check_branch
      %148 = sbr.rel (%p145) target = $region28
    $region27: #{tpu_custom_call.1} parent=5 // pred_region
      %s149 = ssub.s32 %s8, 1
      %p150 = scmp.lt.s32.totalorder %s17, 1
      %s151 = scalar_select %p150, %s17, 1
      %p152 = scmp.lt.s32.totalorder %s18, 0
      %s153 = scalar_select %p152, %s18, 0
      %s154 = sadd.s32 %s153, %s151
      %s155 = smul.addr %s154, 8
      %s156 = scalar_lea.vmem %s0, %s155
      %p157 = pneg %p48
      %p158 = pneg %p45
      %p159 = scmp.lt.s32.totalorder %s17, 1
      %s160 = scalar_select %p159, %s17, 1
      %p161 = scmp.lt.s32.totalorder %s18, 0
      %s162 = scalar_select %p161, %s18, 0
      %s163 = sadd.s32 %s162, %s160
      %s164 = smul.addr %s163, 8
      %s165 = scalar_lea.vmem %s1, %s164
      %p166 = pneg %p76
      %p167 = pneg %p73
      %p168 = pneg %p104
      %p169 = pneg %p101
      %p170 = scmp.lt.s32.totalorder %s17, 1
      %s171 = scalar_select %p170, %s17, 1
      %p172 = scmp.lt.s32.totalorder %s18, 0
      %s173 = scalar_select %p172, %s18, 0
      %s174 = sadd.s32 %s173, %s171
      %s175 = smul.addr %s174, 8
      %s176 = scalar_lea.vmem %s2, %s175
      %p177 = scmp.lt.s32.totalorder %s17, 1
      %s178 = scalar_select %p177, %s17, 1
      %p179 = scmp.lt.s32.totalorder %s18, 0
      %s180 = scalar_select %p179, %s18, 0
      %s181 = sadd.s32 %s180, %s178
      %s182 = smul.addr %s181, 8
      %s183 = scalar_lea.vmem %s0, %s182
      %p184 = scmp.lt.s32.totalorder %s17, 1
      %s185 = scalar_select %p184, %s17, 1
      %p186 = scmp.lt.s32.totalorder %s18, 0
      %s187 = scalar_select %p186, %s18, 0
      %s188 = sadd.s32 %s187, %s185
      %s189 = smul.addr %s188, 8
      %s190 = scalar_lea.vmem %s1, %s189
      %p191 = scmp.lt.s32.totalorder %s17, 1
      %s192 = scalar_select %p191, %s17, 1
      %p193 = scmp.lt.s32.totalorder %s18, 0
      %s194 = scalar_select %p193, %s18, 0
      %s195 = sadd.s32 %s194, %s192
      %s196 = smul.addr %s195, 8
      %s197 = scalar_lea.vmem %s2, %s196
      %v198 = vld [vmem:[%s183] sm:$0xff]
      %v199 = vld [vmem:[%s190] sm:$0xff]
      %vm200 = vcmask 261120
      %v201 = vsel %vm200, %v198, -inf
      %202 = vmax.xlane.f32.xlu0 %v201
      %v203 = vpop.xlane.xlu0 %202
      %v204 = vsub.f32 %v198, %v203
      %v205 = vmul.f32 %v204, 1.442695
      %v206 = vpow.pop %v205
      %v207 = vsel %vm200, %v206, 0.0
      %208 = vadd.xlane.f32.xlu0 %v207
      %v209 = vpop.xlane.xlu0 %208
      %v210 = vlaneseq
      %v211 = vand.u32 %v210, 127
      %212 = vset.pattern.permute.xlu0 0
      %213 = vperm.xlu0 %212, %v199
      %v214 = vpop.permute.xlu0 %213
      %vm215 = vcmp.eq.s32.totalorder %v211, %v214
      %v216 = vsel %vm215, %v204, 0.0
      %v217 = vsel %vm200, %v216, 0.0
      %218 = vadd.xlane.f32.xlu0 %v217
      %v219 = vpop.xlane.xlu0 %218
      %v220 = vlog2.pop %v209
      %v221 = vmul.f32 %v220, 0.6931472
      %v222 = vsub.f32 %v221, %v219
      %vm223 = vcmask 7168
      %224 = vst.msk [vmem:[%s197] sm:$0xff] %vm223, %v222
      %p225 = scmp.lt.s32.totalorder %s17, 1
      %s226 = scalar_select %p225, %s17, 1
      %p227 = scmp.lt.s32.totalorder %s18, 0
      %s228 = scalar_select %p227, %s18, 0
      %s229 = sadd.s32 %s228, %s226
      %s230 = smul.addr %s229, 8
      %s231 = scalar_lea.vmem %s2, %s230
      // Predicated region
      $region29: #{tpu_custom_call.1} parent=27 // pred_check
        %p232 = pneg %p101
      $region30: #{tpu_custom_call.1} parent=27 // pred_check_branch
        %234 = sbr.rel (%p232) target = $region32
      $region31: #{tpu_custom_call.1} parent=27 // pred_region
        _
      $region32: #{tpu_custom_call.1} parent=27 // pred_fallthru
        _
    $region28: #{tpu_custom_call.1} parent=5 // pred_fallthru
      _
    %p235 = scmp.le.s32.totalorder 2, %s8
    // Predicated region
    $region33: #{tpu_custom_call.1} parent=5 // pred_check
      %p236 = pneg %p235
    $region34: #{tpu_custom_call.1} parent=5 // pred_check_branch
      %238 = sbr.rel (%p236) target = $region36
    $region35: #{tpu_custom_call.1} parent=5 // pred_region
      %s239 = ssub.s32 %s8, 2
      // Predicated region
      $region37: #{tpu_custom_call.1} parent=35 // pred_check
        %p240 = pneg %p107
      $region38: #{tpu_custom_call.1} parent=35 // pred_check_branch
        %242 = sbr.rel (%p240) target = $region40
      $region39: #{tpu_custom_call.1} parent=35 // pred_region
        %p243 = scmp.lt.s32.totalorder %s19, 1
        %s244 = scalar_select %p243, %s19, 1
        %p245 = scmp.lt.s32.totalorder %s20, 0
        %s246 = scalar_select %p245, %s20, 0
        %s247 = sadd.s32 %s246, %s244
        %s248 = smul.addr %s247, 8
        %s249 = scalar_lea.vmem %s2, %s248
      $region40: #{tpu_custom_call.1} parent=35 // pred_fallthru
        _
    $region36: #{tpu_custom_call.1} parent=5 // pred_fallthru
      _
  $region6: #{tpu_custom_call.1} parent=0 // loop_footer
    %s12 = sadd.s32 1, %s8
  $region7: #{tpu_custom_call.1} parent=0 // loop_footer_branch
    %7 = sbr.rel target = $region3
  $region8: #{tpu_custom_call.1} parent=0 // loop_exit
    _

</llo_original>
